<compile_context>
chip_gen: v7x
topology: tpu7x:2x2x1
jax: 0.10.0
libtpu: 0.0.40
codegen_flags: <defaults>
</compile_context>

<pallas_src>
import jax
import jax.numpy as jnp
from jax.experimental import pallas as pl
from jax.experimental.pallas import tpu as pltpu

LANE = 128  # TPU lane width; also the padded gate stride in the packed slab.


def _round_up(x, m):
    return ((x + m - 1) // m) * m


# ----------------------------------------------------------------------------
# Static layout of the packed parameter slab (all gate blocks 128-lane aligned).
# ----------------------------------------------------------------------------
def _layout(input_dim, hidden_dim, comm_dim, memory_dim, n_actions):
    H, C, M, NA = hidden_dim, comm_dim, memory_dim, n_actions
    G = LANE
    out_av = G - M                       # av block width so [av | new_mem] == 128 lanes
    assert M <= G and input_dim <= G and C <= G and 2 * H <= G
    assert NA + 1 <= out_av, "n_actions + 1 + memory_dim must fit in 128 lanes"
    blocks = [
        ("w1",    input_dim, H),
        ("w2",    H,         H),
        ("wc",    H,         C),
        ("wp",    C,         H),
        ("wcomb", H,         3 * G + 2 * H),   # [Wir|pad|Wiz|pad|Win|pad|Wa1s|Wv1s]
        ("wmem",  M,         2 * G + M),       # [Whr|pad|Whz|pad|Whn]
        ("wnm",   M,         2 * H),           # [Wa1m|Wv1m]
        ("wout",  2 * H,     out_av),          # blockdiag(Wa2, Wv2), zero-padded cols
    ]
    offs = {}
    row = 0
    for name, r, c in blocks:
        offs[name] = (row, r, c)
        row += _round_up(r, 8)
    bias_off = row
    total_rows = row + 8                       # 7 bias rows in one aligned 8-row block
    width = _round_up(max(c for _, _, c in blocks), LANE)
    return offs, bias_off, total_rows, width, out_av


# ----------------------------------------------------------------------------
# One-time parameter packing into a single contiguous f32 slab (single DMA).
# ----------------------------------------------------------------------------
def pack_params(p, input_dim, hidden_dim, comm_dim, memory_dim, n_actions):
    H, C, M, NA = hidden_dim, comm_dim, memory_dim, n_actions
    G = LANE
    offs, bias_off, rows, width, out_av = _layout(input_dim, H, C, M, NA)

    def place(width_c, pieces):
        nrows = pieces[0][1].shape[0]
        out = jnp.zeros((nrows, width_c), jnp.float32)
        for c0, a in pieces:
            out = out.at[:, c0:c0 + a.shape[1]].set(a.astype(jnp.float32))
        return out

    wcomb_w = offs["wcomb"][2]
    wmem_w = offs["wmem"][2]
    wcomb = place(wcomb_w, [(0, p["wir"]), (G, p["wiz"]), (2 * G, p["win"]),
                            (3 * G, p["wa1s"]), (3 * G + H, p["wv1s"])])
    bcomb = place(wcomb_w, [(0, p["bir"]), (G, p["biz"]), (2 * G, p["bin"]),
                            (3 * G, p["ba1"]), (3 * G + H, p["bv1"])])
    wmem = place(wmem_w, [(0, p["whr"]), (G, p["whz"]), (2 * G, p["whn"])])
    bmem = place(wmem_w, [(0, p["bhr"]), (G, p["bhz"]), (2 * G, p["bhn"])])
    wnm = jnp.concatenate([p["wa1m"], p["wv1m"]], axis=1)

    wout = jnp.zeros((2 * H, out_av), jnp.float32)
    wout = wout.at[0:H, 0:NA].set(p["wa2"].astype(jnp.float32))
    wout = wout.at[H:2 * H, NA:NA + 1].set(p["wv2"].astype(jnp.float32))
    bout = jnp.zeros((1, out_av), jnp.float32)
    bout = bout.at[:, 0:NA].set(p["ba2"].astype(jnp.float32))
    bout = bout.at[:, NA:NA + 1].set(p["bv2"].astype(jnp.float32))

    weights = {"w1": p["w1"], "w2": p["w2"], "wc": p["wc"], "wp": p["wp"],
               "wcomb": wcomb, "wmem": wmem, "wnm": wnm, "wout": wout}
    biases = [p["b1"], p["b2"], p["bc"], p["bp"], bcomb, bmem, bout]

    slab = jnp.zeros((rows, width), jnp.float32)
    for name, (off, r, c) in offs.items():
        slab = slab.at[off:off + r, 0:c].set(weights[name].astype(jnp.float32))
    for k, b in enumerate(biases):
        slab = slab.at[bias_off + k, 0:b.shape[-1]].set(
            b.reshape(-1).astype(jnp.float32))
    return slab


# ----------------------------------------------------------------------------
# Kernel factory: T timesteps in one kernel, memory carried between steps.
# ----------------------------------------------------------------------------
def make_sccn_rollout(n_agents, batch, n_steps, input_dim, hidden_dim, comm_dim,
                      memory_dim, n_actions):
    A, T = n_agents, n_steps
    H, C, M, NA = hidden_dim, comm_dim, memory_dim, n_actions
    G = LANE
    Bp = _round_up(max(batch, 1), 8)           # pad batch to sublane multiple
    R = A * Bp                                 # rows seen by the kernel
    offs, bias_off, _, _, out_av = _layout(input_dim, H, C, M, NA)
    ACT_W = 2 * G                              # [obs | pad | mem | pad] per row

    def kernel(act_ref, p_ref, out_ref):
        f32 = jnp.float32
        dot = lambda a, b: jnp.dot(a, b, preferred_element_type=f32)
        relu = lambda v: jnp.maximum(v, 0.0)

        def wblk(name):
            off, r, c = offs[name]
            return p_ref[off:off + r, 0:c]

        biases = p_ref[bias_off:bias_off + 8, :]   # one aligned (8, width) load

        def brow(k, w):
            return biases[k:k + 1, 0:w]

        # Weights/biases hoisted out of the unrolled time loop (slab DMA'd once,
        # blocks sliced once).
        w1, w2, wc, wp = wblk("w1"), wblk("w2"), wblk("wc"), wblk("wp")
        wcomb, wmemb, wnm, wout = wblk("wcomb"), wblk("wmem"), wblk("wnm"), wblk("wout")
        b1, b2, bc, bp = brow(0, H), brow(1, H), brow(2, C), brow(3, H)
        bcomb = brow(4, offs["wcomb"][2])
        bmem = brow(5, offs["wmem"][2])
        bout = brow(6, out_av)

        # Initial GRU memory sits at lanes [G : G+M] of timestep 0 (128-aligned).
        mem = act_ref[0][:, G:G + M]

        for t in range(T):                         # static unroll; T is compile-time
            row = act_ref[t]                       # (R, ACT_W), one lane-dense load
            x = row[:, 0:input_dim]

            # ---- encoder: Linear -> ReLU -> Linear -> ReLU ------------------
            h1 = relu(dot(x, w1) + b1)
            enc = relu(dot(h1, w2) + b2)

            # ---- communication: mean of other agents' messages --------------
            # (sum over agents - self) / (A-1): pure VPU, no (AB, AB) mix matmul.
            if A > 1:
                msg = jnp.tanh(dot(enc, wc) + bc)
                agent_sum = msg[0:Bp, :]
                for i in range(1, A):
                    agent_sum = agent_sum + msg[i * Bp:(i + 1) * Bp, :]
                all_sum = jnp.concatenate([agent_sum] * A, axis=0)   # (R, C)
                avg_others = (all_sum - msg) * (1.0 / (A - 1))
                comb = enc + relu(dot(avg_others, wp) + bp)
            else:
                comb = enc

            # ---- fused GRU + head pre-activations (gate stride = 128 lanes) --
            ci = dot(comb, wcomb) + bcomb          # (R, 3*128 + 2H)
            hm = dot(mem, wmemb) + bmem            # (R, 2*128 + M)

            r = jax.nn.sigmoid(ci[:, 0:M] + hm[:, 0:M])
            z = jax.nn.sigmoid(ci[:, G:G + M] + hm[:, G:G + M])
            n = jnp.tanh(ci[:, 2 * G:2 * G + M] + r * hm[:, 2 * G:2 * G + M])
            new_mem = (1.0 - z) * n + z * mem

            # ---- action / value heads ----------------------------------------
            nm_heads = dot(new_mem, wnm)                       # (R, 2H)
            hcat = relu(ci[:, 3 * G:3 * G + 2 * H] + nm_heads)
            av = dot(hcat, wout) + bout                        # (R, 96): [act|val|0]

            # ---- single lane-dense 128-wide packed store (no zero buffer) ----
            out_ref[t] = jnp.concatenate([av, new_mem], axis=1)

            mem = new_mem                                      # carry to next step

    vmem = pl.BlockSpec(memory_space=pltpu.MemorySpace.VMEM)
    call = pl.pallas_call(
        kernel,
        out_shape=jax.ShapeDtypeStruct((T, R, G), jnp.float32),
        in_specs=[vmem, vmem],
        out_specs=vmem,
    )

    @jax.jit
    def rollout(obs_seq, social_memories, slab):
        """obs_seq: (T, A, B, input_dim); social_memories: (A, B, memory_dim).

        Returns (action_values, state_values, new_memories), each (T, A, B, .).
        """
        # TODO(synk): when driving an RL loop step-by-step, build/pad this slab
        # once outside the hot path (or use this T-step entry point directly).
        act = jnp.zeros((T, A, Bp, ACT_W), jnp.float32)
        act = act.at[:, :, :batch, 0:input_dim].set(obs_seq.astype(jnp.float32))
        act = act.at[0, :, :batch, G:G + M].set(social_memories.astype(jnp.float32))

        out = call(act.reshape(T, R, ACT_W), slab)
        out = out.reshape(T, A, Bp, G)[:, :, :batch, :]
        action_values = out[..., 0:NA]
        state_values = out[..., NA:NA + 1]
        new_memories = out[..., out_av:out_av + M]
        return action_values, state_values, new_memories

    return rollout


def make_sccn_forward(n_agents, batch, input_dim, hidden_dim, comm_dim,
                      memory_dim, n_actions):
    """Single-step forward matching the PyTorch module (T=1 rollout)."""
    roll = make_sccn_rollout(n_agents, batch, 1, input_dim, hidden_dim, comm_dim,
                             memory_dim, n_actions)

    @jax.jit
    def forward(obs, social_memories, slab):
        a, v, m = roll(obs[jnp.newaxis], social_memories, slab)
        return a[0], v[0], m[0]

    return forward


# ----------------------------------------------------------------------------
# Deterministic parameter construction (PyTorch Linear weights stored as
# (in, out); GRUCell weights split per gate in r, z, n order).
# ----------------------------------------------------------------------------
def make_params(key, input_dim, hidden_dim, comm_dim, memory_dim, n_actions):
    keys = jax.random.split(key, 32)
    k = iter(keys)

    def lin(kw, fan_in, fan_out):
        s = 1.0 / jnp.sqrt(jnp.float32(fan_in))
        return jax.random.uniform(kw, (fan_in, fan_out), jnp.float32, -s, s)

    def bias(kb, fan_in, fan_out):
        s = 1.0 / jnp.sqrt(jnp.float32(fan_in))
        return jax.random.uniform(kb, (1, fan_out), jnp.float32, -s, s)

    p = {}
    p["w1"] = lin(next(k), input_dim, hidden_dim); p["b1"] = bias(next(k), input_dim, hidden_dim)
    p["w2"] = lin(next(k), hidden_dim, hidden_dim); p["b2"] = bias(next(k), hidden_dim, hidden_dim)
    p["wc"] = lin(next(k), hidden_dim, comm_dim); p["bc"] = bias(next(k), hidden_dim, comm_dim)
    p["wp"] = lin(next(k), comm_dim, hidden_dim); p["bp"] = bias(next(k), comm_dim, hidden_dim)
    for g in ("r", "z", "n"):
        p[f"wi{g}"] = lin(next(k), hidden_dim, memory_dim)
        p[f"bi{g}"] = bias(next(k), memory_dim, memory_dim)
        p[f"wh{g}"] = lin(next(k), memory_dim, memory_dim)
        p[f"bh{g}"] = bias(next(k), memory_dim, memory_dim)
    p["wa1s"] = lin(next(k), hidden_dim, hidden_dim)
    p["wa1m"] = lin(next(k), memory_dim, hidden_dim)
    p["ba1"] = bias(next(k), hidden_dim + memory_dim, hidden_dim)
    p["wa2"] = lin(next(k), hidden_dim, n_actions)
    p["ba2"] = bias(next(k), hidden_dim, n_actions)
    p["wv1s"] = lin(next(k), hidden_dim, hidden_dim)
    p["wv1m"] = lin(next(k), memory_dim, hidden_dim)
    p["bv1"] = bias(next(k), hidden_dim + memory_dim, hidden_dim)
    p["wv2"] = lin(next(k), hidden_dim, 1)
    p["bv2"] = bias(next(k), hidden_dim, 1)
    return p


# ----------------------------------------------------------------------------
# Pure-JAX reference (mirrors the PyTorch forward; handles A == 1 too).
# ----------------------------------------------------------------------------
def sccn_reference(obs, mems, params):
    A = obs.shape[0]
    relu = lambda x: jnp.maximum(x, 0.0)

    enc = [relu(relu(obs[i] @ params["w1"] + params["b1"]) @ params["w2"] + params["b2"])
           for i in range(A)]
    msgs = [jnp.tanh(e @ params["wc"] + params["bc"]) for e in enc]
    proc = []
    for i in range(A):
        others = [msgs[j] for j in range(A) if j != i]
        if others:
            avg = jnp.stack(others).mean(axis=0)
            proc.append(enc[i] + relu(avg @ params["wp"] + params["bp"]))
        else:
            proc.append(enc[i])
    acts, vals, new_mems = [], [], []
    for i in range(A):
        c, m = proc[i], mems[i]
        r = jax.nn.sigmoid(c @ params["wir"] + params["bir"] + m @ params["whr"] + params["bhr"])
        z = jax.nn.sigmoid(c @ params["wiz"] + params["biz"] + m @ params["whz"] + params["bhz"])
        n = jnp.tanh(c @ params["win"] + params["bin"] + r * (m @ params["whn"] + params["bhn"]))
        nm = (1.0 - z) * n + z * m
        ah = relu(c @ params["wa1s"] + nm @ params["wa1m"] + params["ba1"])
        vh = relu(c @ params["wv1s"] + nm @ params["wv1m"] + params["bv1"])
        acts.append(ah @ params["wa2"] + params["ba2"])
        vals.append(vh @ params["wv2"] + params["bv2"])
        new_mems.append(nm)
    return jnp.stack(acts), jnp.stack(vals), jnp.stack(new_mems)


def sccn_reference_rollout(obs_seq, mem0, params):
    mems = mem0
    acts, vals, mem_list = [], [], []
    for t in range(obs_seq.shape[0]):
        a, v, mems = sccn_reference(obs_seq[t], mems, params)
        acts.append(a); vals.append(v); mem_list.append(mems)
    return jnp.stack(acts), jnp.stack(vals), jnp.stack(mem_list)


if __name__ == "__main__":
    n_agents, batch = 3, 2
    input_dim, hidden_dim, comm_dim, memory_dim, n_actions = 8, 32, 16, 32, 5

    key = jax.random.PRNGKey(0)
    kp, ko, km, ks = jax.random.split(key, 4)

    params = make_params(kp, input_dim, hidden_dim, comm_dim, memory_dim, n_actions)
    slab = pack_params(params, input_dim, hidden_dim, comm_dim, memory_dim, n_actions)

    obs = jax.random.normal(ko, (n_agents, batch, input_dim), jnp.float32)
    social_memories = jax.random.normal(km, (n_agents, batch, memory_dim), jnp.float32)
    # hidden_states are accepted but unused by the PyTorch forward; omitted here.

    # --- single-step forward (module semantics) ---------------------------------
    fwd = make_sccn_forward(n_agents, batch, input_dim, hidden_dim, comm_dim,
                            memory_dim, n_actions)
    act, val, new_mem = fwd(obs, social_memories, slab)
    jax.block_until_ready((act, val, new_mem))

    act_r, val_r, mem_r = sccn_reference(obs, social_memories, params)
    assert jnp.allclose(act, act_r, atol=1e-4, rtol=1e-4)
    assert jnp.allclose(val, val_r, atol=1e-4, rtol=1e-4)
    assert jnp.allclose(new_mem, mem_r, atol=1e-4, rtol=1e-4)

    # --- T-step rollout: time loop inside the kernel, slab DMA'd once -----------
    T = 4
    obs_seq = jax.random.normal(ks, (T, n_agents, batch, input_dim), jnp.float32)
    roll = make_sccn_rollout(n_agents, batch, T, input_dim, hidden_dim, comm_dim,
                             memory_dim, n_actions)
    ra, rv, rm = roll(obs_seq, social_memories, slab)
    jax.block_until_ready((ra, rv, rm))

    ra_r, rv_r, rm_r = sccn_reference_rollout(obs_seq, social_memories, params)
    assert jnp.allclose(ra, ra_r, atol=1e-4, rtol=1e-4)
    assert jnp.allclose(rv, rv_r, atol=1e-4, rtol=1e-4)
    assert jnp.allclose(rm, rm_r, atol=1e-4, rtol=1e-4)

    # --- A == 1 degenerate (no-communication) path, now covered by the test -----
    fwd1 = make_sccn_forward(1, batch, input_dim, hidden_dim, comm_dim,
                             memory_dim, n_actions)
    a1, v1, m1 = fwd1(obs[:1], social_memories[:1], slab)
    jax.block_until_ready((a1, v1, m1))
    a1_r, v1_r, m1_r = sccn_reference(obs[:1], social_memories[:1], params)
    assert jnp.allclose(a1, a1_r, atol=1e-4, rtol=1e-4)
    assert jnp.allclose(v1, v1_r, atol=1e-4, rtol=1e-4)
    assert jnp.allclose(m1, m1_r, atol=1e-4, rtol=1e-4)

    print("KERNEL_OK")
</pallas_src>

<mosaic_0001>
module attributes {stable_mosaic.version = 11 : i64} {
  func.func @kernel(%arg0: memref<1x24x256xf32, #tpu.memory_space<vmem>>, %arg1: memref<256x512xf32, #tpu.memory_space<vmem>>, %arg2: memref<1x24x128xf32, #tpu.memory_space<vmem>>) attributes {dimension_semantics = [], scalar_prefetch = 0 : i64, scratch_operands = 0 : i64, tpu.core_type = #tpu.core_type<tc>} {
    %c248 = arith.constant 248 : index
    %c0 = arith.constant 0 : index
    %0 = vector.load %arg1[%c248, %c0] : memref<256x512xf32, #tpu.memory_space<vmem>>, vector<8x512xf32>
    %c0_0 = arith.constant 0 : index
    %c0_1 = arith.constant 0 : index
    %1 = vector.load %arg1[%c0_0, %c0_1] : memref<256x512xf32, #tpu.memory_space<vmem>>, vector<8x32xf32>
    %c8 = arith.constant 8 : index
    %c0_2 = arith.constant 0 : index
    %2 = vector.load %arg1[%c8, %c0_2] : memref<256x512xf32, #tpu.memory_space<vmem>>, vector<32x32xf32>
    %c40 = arith.constant 40 : index
    %c0_3 = arith.constant 0 : index
    %3 = vector.load %arg1[%c40, %c0_3] : memref<256x512xf32, #tpu.memory_space<vmem>>, vector<32x16xf32>
    %c72 = arith.constant 72 : index
    %c0_4 = arith.constant 0 : index
    %4 = vector.load %arg1[%c72, %c0_4] : memref<256x512xf32, #tpu.memory_space<vmem>>, vector<16x32xf32>
    %c88 = arith.constant 88 : index
    %c0_5 = arith.constant 0 : index
    %5 = vector.load %arg1[%c88, %c0_5] : memref<256x512xf32, #tpu.memory_space<vmem>>, vector<32x448xf32>
    %c120 = arith.constant 120 : index
    %c0_6 = arith.constant 0 : index
    %6 = vector.load %arg1[%c120, %c0_6] : memref<256x512xf32, #tpu.memory_space<vmem>>, vector<32x288xf32>
    %c152 = arith.constant 152 : index
    %c0_7 = arith.constant 0 : index
    %7 = vector.load %arg1[%c152, %c0_7] : memref<256x512xf32, #tpu.memory_space<vmem>>, vector<32x64xf32>
    %c184 = arith.constant 184 : index
    %c0_8 = arith.constant 0 : index
    %8 = vector.load %arg1[%c184, %c0_8] : memref<256x512xf32, #tpu.memory_space<vmem>>, vector<64x96xf32>
    %9 = vector.extract_strided_slice %0 {offsets = [0, 0], sizes = [1, 32], strides = [1, 1]} : vector<8x512xf32> to vector<1x32xf32>
    %10 = vector.extract_strided_slice %0 {offsets = [1, 0], sizes = [1, 32], strides = [1, 1]} : vector<8x512xf32> to vector<1x32xf32>
    %11 = vector.extract_strided_slice %0 {offsets = [2, 0], sizes = [1, 16], strides = [1, 1]} : vector<8x512xf32> to vector<1x16xf32>
    %12 = vector.extract_strided_slice %0 {offsets = [3, 0], sizes = [1, 32], strides = [1, 1]} : vector<8x512xf32> to vector<1x32xf32>
    %13 = vector.extract_strided_slice %0 {offsets = [4, 0], sizes = [1, 448], strides = [1, 1]} : vector<8x512xf32> to vector<1x448xf32>
    %14 = vector.extract_strided_slice %0 {offsets = [5, 0], sizes = [1, 288], strides = [1, 1]} : vector<8x512xf32> to vector<1x288xf32>
    %15 = vector.extract_strided_slice %0 {offsets = [6, 0], sizes = [1, 96], strides = [1, 1]} : vector<8x512xf32> to vector<1x96xf32>
    %c0_9 = arith.constant 0 : index
    %c0_10 = arith.constant 0 : index
    %c0_11 = arith.constant 0 : index
    %16 = vector.load %arg0[%c0_9, %c0_10, %c0_11] : memref<1x24x256xf32, #tpu.memory_space<vmem>>, vector<1x24x256xf32>
    %17 = vector.shape_cast %16 : vector<1x24x256xf32> to vector<24x256xf32>
    %18 = vector.extract_strided_slice %17 {offsets = [0, 128], sizes = [24, 32], strides = [1, 1]} : vector<24x256xf32> to vector<24x32xf32>
    %c0_12 = arith.constant 0 : index
    %c0_13 = arith.constant 0 : index
    %c0_14 = arith.constant 0 : index
    %19 = vector.load %arg0[%c0_12, %c0_13, %c0_14] : memref<1x24x256xf32, #tpu.memory_space<vmem>>, vector<1x24x256xf32>
    %20 = vector.shape_cast %19 : vector<1x24x256xf32> to vector<24x256xf32>
    %21 = vector.extract_strided_slice %20 {offsets = [0, 0], sizes = [24, 8], strides = [1, 1]} : vector<24x256xf32> to vector<24x8xf32>
    %cst = arith.constant dense<0.000000e+00> : vector<24x32xf32>
    %22 = tpu.matmul %21, %1, %cst {dimension_numbers = #tpu.dot_dimension_numbers<[1], [0], [0], [1], [0, 0, 1, 1], [], []>} : vector<24x8xf32>, vector<8x32xf32>, vector<24x32xf32> -> vector<24x32xf32>
    %23 = vector.broadcast %9 : vector<1x32xf32> to vector<24x32xf32>
    %24 = arith.addf %22, %23 : vector<24x32xf32>
    %cst_15 = arith.constant 0.000000e+00 : f32
    %25 = vector.broadcast %cst_15 : f32 to vector<24x32xf32>
    %26 = arith.maximumf %24, %25 : vector<24x32xf32>
    %cst_16 = arith.constant dense<0.000000e+00> : vector<24x32xf32>
    %27 = tpu.matmul %26, %2, %cst_16 {dimension_numbers = #tpu.dot_dimension_numbers<[1], [0], [0], [1], [0, 0, 1, 1], [], []>} : vector<24x32xf32>, vector<32x32xf32>, vector<24x32xf32> -> vector<24x32xf32>
    %28 = vector.broadcast %10 : vector<1x32xf32> to vector<24x32xf32>
    %29 = arith.addf %27, %28 : vector<24x32xf32>
    %cst_17 = arith.constant 0.000000e+00 : f32
    %30 = vector.broadcast %cst_17 : f32 to vector<24x32xf32>
    %31 = arith.maximumf %29, %30 : vector<24x32xf32>
    %cst_18 = arith.constant dense<0.000000e+00> : vector<24x16xf32>
    %32 = tpu.matmul %31, %3, %cst_18 {dimension_numbers = #tpu.dot_dimension_numbers<[1], [0], [0], [1], [0, 0, 1, 1], [], []>} : vector<24x32xf32>, vector<32x16xf32>, vector<24x16xf32> -> vector<24x16xf32>
    %33 = vector.broadcast %11 : vector<1x16xf32> to vector<24x16xf32>
    %34 = arith.addf %32, %33 : vector<24x16xf32>
    %35 = math.tanh %34 : vector<24x16xf32>
    %36 = vector.extract_strided_slice %35 {offsets = [0, 0], sizes = [8, 16], strides = [1, 1]} : vector<24x16xf32> to vector<8x16xf32>
    %37 = vector.extract_strided_slice %35 {offsets = [8, 0], sizes = [8, 16], strides = [1, 1]} : vector<24x16xf32> to vector<8x16xf32>
    %38 = arith.addf %36, %37 : vector<8x16xf32>
    %39 = vector.extract_strided_slice %35 {offsets = [16, 0], sizes = [8, 16], strides = [1, 1]} : vector<24x16xf32> to vector<8x16xf32>
    %40 = arith.addf %38, %39 : vector<8x16xf32>
    %41 = tpu.concatenate %40, %40, %40 in 0 : vector<8x16xf32>, vector<8x16xf32>, vector<8x16xf32> -> vector<24x16xf32>
    %42 = arith.subf %41, %35 : vector<24x16xf32>
    %cst_19 = arith.constant 5.000000e-01 : f32
    %43 = vector.broadcast %cst_19 : f32 to vector<24x16xf32>
    %44 = arith.mulf %42, %43 : vector<24x16xf32>
    %cst_20 = arith.constant dense<0.000000e+00> : vector<24x32xf32>
    %45 = tpu.matmul %44, %4, %cst_20 {dimension_numbers = #tpu.dot_dimension_numbers<[1], [0], [0], [1], [0, 0, 1, 1], [], []>} : vector<24x16xf32>, vector<16x32xf32>, vector<24x32xf32> -> vector<24x32xf32>
    %46 = vector.broadcast %12 : vector<1x32xf32> to vector<24x32xf32>
    %47 = arith.addf %45, %46 : vector<24x32xf32>
    %cst_21 = arith.constant 0.000000e+00 : f32
    %48 = vector.broadcast %cst_21 : f32 to vector<24x32xf32>
    %49 = arith.maximumf %47, %48 : vector<24x32xf32>
    %50 = arith.addf %31, %49 : vector<24x32xf32>
    %cst_22 = arith.constant dense<0.000000e+00> : vector<24x448xf32>
    %51 = tpu.matmul %50, %5, %cst_22 {dimension_numbers = #tpu.dot_dimension_numbers<[1], [0], [0], [1], [0, 0, 1, 1], [], []>} : vector<24x32xf32>, vector<32x448xf32>, vector<24x448xf32> -> vector<24x448xf32>
    %52 = vector.broadcast %13 : vector<1x448xf32> to vector<24x448xf32>
    %53 = arith.addf %51, %52 : vector<24x448xf32>
    %cst_23 = arith.constant dense<0.000000e+00> : vector<24x288xf32>
    %54 = tpu.matmul %18, %6, %cst_23 {dimension_numbers = #tpu.dot_dimension_numbers<[1], [0], [0], [1], [0, 0, 1, 1], [], []>} : vector<24x32xf32>, vector<32x288xf32>, vector<24x288xf32> -> vector<24x288xf32>
    %55 = vector.broadcast %14 : vector<1x288xf32> to vector<24x288xf32>
    %56 = arith.addf %54, %55 : vector<24x288xf32>
    %57 = vector.extract_strided_slice %53 {offsets = [0, 0], sizes = [24, 32], strides = [1, 1]} : vector<24x448xf32> to vector<24x32xf32>
    %58 = vector.extract_strided_slice %56 {offsets = [0, 0], sizes = [24, 32], strides = [1, 1]} : vector<24x288xf32> to vector<24x32xf32>
    %59 = arith.addf %57, %58 : vector<24x32xf32>
    %60 = arith.negf %59 : vector<24x32xf32>
    %61 = math.exp %60 : vector<24x32xf32>
    %cst_24 = arith.constant 1.000000e+00 : f32
    %62 = vector.broadcast %cst_24 : f32 to vector<24x32xf32>
    %63 = arith.addf %62, %61 : vector<24x32xf32>
    %64 = arith.divf %62, %63 : vector<24x32xf32>
    %65 = vector.extract_strided_slice %53 {offsets = [0, 128], sizes = [24, 32], strides = [1, 1]} : vector<24x448xf32> to vector<24x32xf32>
    %66 = vector.extract_strided_slice %56 {offsets = [0, 128], sizes = [24, 32], strides = [1, 1]} : vector<24x288xf32> to vector<24x32xf32>
    %67 = arith.addf %65, %66 : vector<24x32xf32>
    %68 = arith.negf %67 : vector<24x32xf32>
    %69 = math.exp %68 : vector<24x32xf32>
    %cst_25 = arith.constant 1.000000e+00 : f32
    %70 = vector.broadcast %cst_25 : f32 to vector<24x32xf32>
    %71 = arith.addf %70, %69 : vector<24x32xf32>
    %72 = arith.divf %70, %71 : vector<24x32xf32>
    %73 = vector.extract_strided_slice %53 {offsets = [0, 256], sizes = [24, 32], strides = [1, 1]} : vector<24x448xf32> to vector<24x32xf32>
    %74 = vector.extract_strided_slice %56 {offsets = [0, 256], sizes = [24, 32], strides = [1, 1]} : vector<24x288xf32> to vector<24x32xf32>
    %75 = arith.mulf %64, %74 : vector<24x32xf32>
    %76 = arith.addf %73, %75 : vector<24x32xf32>
    %77 = math.tanh %76 : vector<24x32xf32>
    %cst_26 = arith.constant 1.000000e+00 : f32
    %78 = vector.broadcast %cst_26 : f32 to vector<24x32xf32>
    %79 = arith.subf %78, %72 : vector<24x32xf32>
    %80 = arith.mulf %79, %77 : vector<24x32xf32>
    %81 = arith.mulf %72, %18 : vector<24x32xf32>
    %82 = arith.addf %80, %81 : vector<24x32xf32>
    %cst_27 = arith.constant dense<0.000000e+00> : vector<24x64xf32>
    %83 = tpu.matmul %82, %7, %cst_27 {dimension_numbers = #tpu.dot_dimension_numbers<[1], [0], [0], [1], [0, 0, 1, 1], [], []>} : vector<24x32xf32>, vector<32x64xf32>, vector<24x64xf32> -> vector<24x64xf32>
    %84 = vector.extract_strided_slice %53 {offsets = [0, 384], sizes = [24, 64], strides = [1, 1]} : vector<24x448xf32> to vector<24x64xf32>
    %85 = arith.addf %84, %83 : vector<24x64xf32>
    %cst_28 = arith.constant 0.000000e+00 : f32
    %86 = vector.broadcast %cst_28 : f32 to vector<24x64xf32>
    %87 = arith.maximumf %85, %86 : vector<24x64xf32>
    %cst_29 = arith.constant dense<0.000000e+00> : vector<24x96xf32>
    %88 = tpu.matmul %87, %8, %cst_29 {dimension_numbers = #tpu.dot_dimension_numbers<[1], [0], [0], [1], [0, 0, 1, 1], [], []>} : vector<24x64xf32>, vector<64x96xf32>, vector<24x96xf32> -> vector<24x96xf32>
    %89 = vector.broadcast %15 : vector<1x96xf32> to vector<24x96xf32>
    %90 = arith.addf %88, %89 : vector<24x96xf32>
    %91 = tpu.concatenate %90, %82 in 1 : vector<24x96xf32>, vector<24x32xf32> -> vector<24x128xf32>
    %c0_30 = arith.constant 0 : index
    %c0_31 = arith.constant 0 : index
    %c0_32 = arith.constant 0 : index
    %92 = vector.load %arg2[%c0_30, %c0_31, %c0_32] : memref<1x24x128xf32, #tpu.memory_space<vmem>>, vector<1x24x128xf32>
    %93 = vector.shape_cast %92 : vector<1x24x128xf32> to vector<24x128xf32>
    %94 = vector.shape_cast %91 : vector<24x128xf32> to vector<1x24x128xf32>
    tpu.vector_store %arg2[%c0_30, %c0_31, %c0_32], %94 {strides = array<i32>} : memref<1x24x128xf32, #tpu.memory_space<vmem>>, vector<1x24x128xf32>,
    return
  }
}

</mosaic_0001>

<llo_original>
// kernel: rollout.1
$region0: #{rollout.1}
  #allocation0 [shape = 'u32[]', space=smem, size = 0x4, offset = 0x4, fixed_abs, tag = 'smem constant byte address 0x4 - core index']
  #allocation1 [shape = 'u32[144,128]{1,0:T(1,128)}', space=vmem, size = 0x12000, scoped, tag = 'internal scratch']
  %s0 = inlined_call_operand.vmem [shape: f32[1,24,256], index: 0, kind: input, shape index: {}]
  %s1 = inlined_call_operand.hbm [shape: f32[256,512], index: 1, kind: input, shape index: {}]
  %s2 = inlined_call_operand.vmem [shape: f32[1,24,128], index: 2, kind: output, shape index: {}]
  %s3 = sld [smem:[#allocation0]]
  $region22: #{rollout.1} parent=0
    _
  %s5 = ssub.s32 1, %s3
  %s6 = scalar_select 0, %s5, %s3
  $region1: #{rollout.1} parent=0
    #allocation2 [shape = 'u8[524288]{0}', space=vmem, size = 0x80000, scoped, tag = 'input window, operand 1, single buffered']
    #allocation3 [shape = 's32[1]{0}', space=sflag, size = 0x4, scoped, tag = 'scoped memory for rollout.1']
    %7 = vsyncpa [#allocation3], 0
    // Predicated region
    $region2: #{rollout.1} parent=1 // pred_check
      _
    $region3: #{rollout.1} parent=1 // pred_check_branch
      %9 = sbr.rel (0) target = $region5
    $region4: #{rollout.1} parent=1 // pred_region
      _
    $region5: #{rollout.1} parent=1 // pred_fallthru
      _
    // Predicated region
    $region6: #{rollout.1} parent=1 // pred_check
      _
    $region7: #{rollout.1} parent=1 // pred_check_branch
      %11 = sbr.rel (0) target = $region9
    $region8: #{rollout.1} parent=1 // pred_region
      %s13 = ssub.s32 16384, 16384
      %14 = vsyncadd [#allocation3], %s13
      %s15 = sshll.u32 [#allocation2], 4
      %s16 = int_to_ptr.vmem [resolvable:$true] %s15
      %21 = dma.hbm_to_vmem [thread:$0]  %s1, 16384, %s16, [#allocation3], 512, 512, 32
    $region9: #{rollout.1} parent=1 // pred_fallthru
      _
    // Predicated region
    $region10: #{rollout.1} parent=1 // pred_check
      _
    $region11: #{rollout.1} parent=1 // pred_check_branch
      %23 = sbr.rel (0) target = $region13
    $region12: #{rollout.1} parent=1 // pred_region
      %24 = dma.done [#allocation3], 16384
    $region13: #{rollout.1} parent=1 // pred_fallthru
      _
    %v25 = vld [vmem:[#allocation2 + $0x3e0] sm:$0xff]
    %v26 = vld [vmem:[#allocation2 + $0x3e8] sm:$0xff]
    %v27 = vld [vmem:[#allocation2 + $0x3f0] sm:$0xff]
    %v28 = vld [vmem:[#allocation2 + $0x3f8] sm:$0xff]
    %v29 = vld [vmem:[#allocation2] sm:$0xff]
    %v30 = vld [vmem:[#allocation2 + $0x20] sm:$0xff]
    %v31 = vld [vmem:[#allocation2 + $0x40] sm:$0xff]
    %v32 = vld [vmem:[#allocation2 + $0x60] sm:$0xff]
    %v33 = vld [vmem:[#allocation2 + $0x80] sm:$0xff]
    %v34 = vld [vmem:[#allocation2 + $0xa0] sm:$0xff]
    %v35 = vld [vmem:[#allocation2 + $0xc0] sm:$0xff]
    %v36 = vld [vmem:[#allocation2 + $0xe0] sm:$0xff]
    %v37 = vld [vmem:[#allocation2 + $0x100] sm:$0xff]
    %v38 = vld [vmem:[#allocation2 + $0x120] sm:$0xff]
    %v39 = vld [vmem:[#allocation2 + $0x140] sm:$0xff]
    %v40 = vld [vmem:[#allocation2 + $0x160] sm:$0xff]
    %v41 = vld [vmem:[#allocation2 + $0x168] sm:$0xff]
    %v42 = vld [vmem:[#allocation2 + $0x170] sm:$0xff]
    %v43 = vld [vmem:[#allocation2 + $0x178] sm:$0xff]
    %v44 = vld [vmem:[#allocation2 + $0x180] sm:$0xff]
    %v45 = vld [vmem:[#allocation2 + $0x188] sm:$0xff]
    %v46 = vld [vmem:[#allocation2 + $0x190] sm:$0xff]
    %v47 = vld [vmem:[#allocation2 + $0x198] sm:$0xff]
    %v48 = vld [vmem:[#allocation2 + $0x1a0] sm:$0xff]
    %v49 = vld [vmem:[#allocation2 + $0x1a8] sm:$0xff]
    %v50 = vld [vmem:[#allocation2 + $0x1b0] sm:$0xff]
    %v51 = vld [vmem:[#allocation2 + $0x1b8] sm:$0xff]
    %v52 = vld [vmem:[#allocation2 + $0x1c0] sm:$0xff]
    %v53 = vld [vmem:[#allocation2 + $0x1c8] sm:$0xff]
    %v54 = vld [vmem:[#allocation2 + $0x1d0] sm:$0xff]
    %v55 = vld [vmem:[#allocation2 + $0x1d8] sm:$0xff]
    %v56 = vld [vmem:[#allocation2 + $0x1e0] sm:$0xff]
    %v57 = vld [vmem:[#allocation2 + $0x1e8] sm:$0xff]
    %v58 = vld [vmem:[#allocation2 + $0x1f0] sm:$0xff]
    %v59 = vld [vmem:[#allocation2 + $0x200] sm:$0xff]
    %v60 = vld [vmem:[#allocation2 + $0x208] sm:$0xff]
    %v61 = vld [vmem:[#allocation2 + $0x210] sm:$0xff]
    %v62 = vld [vmem:[#allocation2 + $0x220] sm:$0xff]
    %v63 = vld [vmem:[#allocation2 + $0x228] sm:$0xff]
    %v64 = vld [vmem:[#allocation2 + $0x230] sm:$0xff]
    %v65 = vld [vmem:[#allocation2 + $0x240] sm:$0xff]
    %v66 = vld [vmem:[#allocation2 + $0x248] sm:$0xff]
    %v67 = vld [vmem:[#allocation2 + $0x250] sm:$0xff]
    %v68 = vld [vmem:[#allocation2 + $0x260] sm:$0xff]
    %v69 = vld [vmem:[#allocation2 + $0x280] sm:$0xff]
    %v70 = vld [vmem:[#allocation2 + $0x2a0] sm:$0xff]
    %v71 = vld [vmem:[#allocation2 + $0x2c0] sm:$0xff]
    %v72 = vld [vmem:[#allocation2 + $0x2e0] sm:$0xff]
    %v73 = vld [vmem:[#allocation2 + $0x300] sm:$0xff]
    %v74 = vld [vmem:[#allocation2 + $0x320] sm:$0xff]
    %v75 = vld [vmem:[#allocation2 + $0x340] sm:$0xff]
    %v76 = vld [vmem:[#allocation2 + $0x360] sm:$0xff]
    %v77 = vld [vmem:[#allocation2 + $0x380] sm:$0xff]
    %v78 = vld [vmem:[#allocation2 + $0x3a0] sm:$0xff]
    %v79 = vld [vmem:[#allocation2 + $0x3c0] sm:$0xff]
    %v80 = vld [vmem:[%s0] sm:$0xff]
    %v81 = vld [vmem:[%s0 + $0x8] sm:$0xff]
    %v82 = vld [vmem:[%s0 + $0x10] sm:$0xff]
    %v83 = vld [vmem:[%s0 + $0x18] sm:$0xff]
    %v84 = vld [vmem:[%s0 + $0x20] sm:$0xff]
    %v85 = vld [vmem:[%s0 + $0x28] sm:$0xff]
    %v86 = vlaneseq
    %v87 = vshrl.u32 %v86, 7
    %v88 = vsub.s32 0, %v87
    %v89 = vrot.slane %v25, %v88
    %vm90 = vcmask 64512
    %v92 = vsel %vm90, %v80, 0
    %v95 = vsel %vm90, %v82, 0
    %v98 = vsel %vm90, %v84, 0
    %100 = vmatprep.subr.mxu0 0.0
    %101 = vmatpush1.msra.mxu0 %v29
    %102 = vmatprep.subr.mxu0 0.0
    %103 = vmatpush1.msra.mxu0 0.0
    %104 = vmatprep.subr.mxu0 0.0
    %105 = vmatpush1.msra.mxu0 0.0
    %106 = vmatprep.subr.mxu0 0.0
    %107 = vmatpush1.msra.mxu0 0.0
    %108 = vmatprep.subr.mxu0 0.0
    %109 = vmatpush1.msra.mxu0 0.0
    %110 = vmatprep.subr.mxu0 0.0
    %111 = vmatpush1.msra.mxu0 0.0
    %112 = vmatprep.subr.mxu0 0.0
    %113 = vmatpush1.msra.mxu0 0.0
    %114 = vmatprep.subr.mxu0 0.0
    %115 = vmatpush1.msra.mxu0 0.0
    %116 = vmatprep.subr.mxu0 0.0
    %117 = vmatpush1.msra.mxu0 0.0
    %118 = vmatprep.subr.mxu0 0.0
    %119 = vmatpush1.msra.mxu0 0.0
    %120 = vmatprep.subr.mxu0 0.0
    %121 = vmatpush1.msra.mxu0 0.0
    %122 = vmatprep.subr.mxu0 0.0
    %123 = vmatpush1.msra.mxu0 0.0
    %124 = vmatprep.subr.mxu0 0.0
    %125 = vmatpush1.msra.mxu0 0.0
    %126 = vmatprep.subr.mxu0 0.0
    %127 = vmatpush1.msra.mxu0 0.0
    %128 = vmatprep.subr.mxu0 0.0
    %129 = vmatpush1.msra.mxu0 0.0
    %130 = vmatprep.subr.mxu0 0.0
    %131 = vmatpush1.msra.mxu0 0.0
    %132 = vmatprep.subr.mxu0 0.0
    %133 = vmatpush1.msra.mxu0 0.0
    %134 = vmatprep.subr.mxu0 0.0
    %135 = vmatpush1.msra.mxu0 0.0
    %136 = vmatprep.subr.mxu0 0.0
    %137 = vmatpush1.msra.mxu0 0.0
    %138 = vmatprep.subr.mxu0 0.0
    %139 = vmatpush1.msra.mxu0 0.0
    %140 = vmatprep.subr.mxu0 0.0
    %141 = vmatpush1.msra.mxu0 0.0
    %142 = vmatprep.subr.mxu0 0.0
    %143 = vmatpush1.msra.mxu0 0.0
    %144 = vmatprep.subr.mxu0 0.0
    %145 = vmatpush1.msra.mxu0 0.0
    %146 = vmatprep.subr.mxu0 0.0
    %147 = vmatpush1.msra.mxu0 0.0
    %148 = vmatprep.subr.mxu0 0.0
    %149 = vmatpush1.msra.mxu0 0.0
    %150 = vmatprep.subr.mxu0 0.0
    %151 = vmatpush1.msra.mxu0 0.0
    %152 = vmatprep.subr.mxu0 0.0
    %153 = vmatpush1.msra.mxu0 0.0
    %154 = vmatprep.subr.mxu0 0.0
    %155 = vmatpush1.msra.mxu0 0.0
    %156 = vmatprep.subr.mxu0 0.0
    %157 = vmatpush1.msra.mxu0 0.0
    %158 = vmatprep.subr.mxu0 0.0
    %159 = vmatpush1.msra.mxu0 0.0
    %160 = vmatprep.subr.mxu0 0.0
    %161 = vmatpush1.msra.mxu0 0.0
    %162 = vmatprep.subr.mxu0 0.0
    %163 = vmatpush1.msra.mxu0 0.0
    %164 = vmatprep.mubr.f32.mxu0 0.0
    %165 = vmatmul.mubr.f32.gmra.mrb[0].mxu0 %v92
    %v166 = vpop.f32.mrb[0].mxu0
    %v167 = vadd.f32 %v89, %v166
    %v168 = vpop.f32.mrb[0].mxu0
    %169 = vmatprep.mubr.f32.mxu0 0.0
    %170 = vmatmul.mubr.f32.gmra.mrb[0].mxu0 %v95
    %v171 = vpop.f32.mrb[0].mxu0
    %v172 = vadd.f32 %v89, %v171
    %v173 = vpop.f32.mrb[0].mxu0
    %174 = vmatprep.mubr.f32.mxu0 0.0
    %175 = vmatmul.mubr.f32.gmra.mrb[0].mxu0 %v98
    %v176 = vpop.f32.mrb[0].mxu0
    %v177 = vadd.f32 %v89, %v176
    %v178 = vpop.f32.mrb[0].mxu0
    %179 = vdwg.mxu0
    %v180 = vmax.f32 %v167, 0.0
    %v181 = vmax.f32 %v172, 0.0
    %v182 = vmax.f32 %v177, 0.0
    %v183 = vlaneseq
    %v184 = vshrl.u32 %v183, 7
    %v185 = vsub.s32 1, %v184
    %v186 = vrot.slane %v25, %v185
    %vm187 = vcmask 261120
    %v189 = vsel %vm187, %v180, 0
    %v192 = vsel %vm187, %v181, 0
    %v195 = vsel %vm187, %v182, 0
    %197 = vmatprep.subr.mxu0 0.0
    %198 = vmatpush1.msra.mxu0 %v30
    %199 = vmatprep.subr.mxu0 0.0
    %200 = vmatpush1.msra.mxu0 %v31
    %201 = vmatprep.subr.mxu0 0.0
    %202 = vmatpush1.msra.mxu0 %v32
    %203 = vmatprep.subr.mxu0 0.0
    %204 = vmatpush1.msra.mxu0 %v33
    %205 = vmatprep.subr.mxu0 0.0
    %206 = vmatpush1.msra.mxu0 0.0
    %207 = vmatprep.subr.mxu0 0.0
    %208 = vmatpush1.msra.mxu0 0.0
    %209 = vmatprep.subr.mxu0 0.0
    %210 = vmatpush1.msra.mxu0 0.0
    %211 = vmatprep.subr.mxu0 0.0
    %212 = vmatpush1.msra.mxu0 0.0
    %213 = vmatprep.subr.mxu0 0.0
    %214 = vmatpush1.msra.mxu0 0.0
    %215 = vmatprep.subr.mxu0 0.0
    %216 = vmatpush1.msra.mxu0 0.0
    %217 = vmatprep.subr.mxu0 0.0
    %218 = vmatpush1.msra.mxu0 0.0
    %219 = vmatprep.subr.mxu0 0.0
    %220 = vmatpush1.msra.mxu0 0.0
    %221 = vmatprep.subr.mxu0 0.0
    %222 = vmatpush1.msra.mxu0 0.0
    %223 = vmatprep.subr.mxu0 0.0
    %224 = vmatpush1.msra.mxu0 0.0
    %225 = vmatprep.subr.mxu0 0.0
    %226 = vmatpush1.msra.mxu0 0.0
    %227 = vmatprep.subr.mxu0 0.0
    %228 = vmatpush1.msra.mxu0 0.0
    %229 = vmatprep.subr.mxu0 0.0
    %230 = vmatpush1.msra.mxu0 0.0
    %231 = vmatprep.subr.mxu0 0.0
    %232 = vmatpush1.msra.mxu0 0.0
    %233 = vmatprep.subr.mxu0 0.0
    %234 = vmatpush1.msra.mxu0 0.0
    %235 = vmatprep.subr.mxu0 0.0
    %236 = vmatpush1.msra.mxu0 0.0
    %237 = vmatprep.subr.mxu0 0.0
    %238 = vmatpush1.msra.mxu0 0.0
    %239 = vmatprep.subr.mxu0 0.0
    %240 = vmatpush1.msra.mxu0 0.0
    %241 = vmatprep.subr.mxu0 0.0
    %242 = vmatpush1.msra.mxu0 0.0
    %243 = vmatprep.subr.mxu0 0.0
    %244 = vmatpush1.msra.mxu0 0.0
    %245 = vmatprep.subr.mxu0 0.0
    %246 = vmatpush1.msra.mxu0 0.0
    %247 = vmatprep.subr.mxu0 0.0
    %248 = vmatpush1.msra.mxu0 0.0
    %249 = vmatprep.subr.mxu0 0.0
    %250 = vmatpush1.msra.mxu0 0.0
    %251 = vmatprep.subr.mxu0 0.0
    %252 = vmatpush1.msra.mxu0 0.0
    %253 = vmatprep.subr.mxu0 0.0
    %254 = vmatpush1.msra.mxu0 0.0
    %255 = vmatprep.subr.mxu0 0.0
    %256 = vmatpush1.msra.mxu0 0.0
    %257 = vmatprep.subr.mxu0 0.0
    %258 = vmatpush1.msra.mxu0 0.0
    %259 = vmatprep.subr.mxu0 0.0
    %260 = vmatpush1.msra.mxu0 0.0
    %261 = vmatprep.mubr.f32.mxu0 0.0
    %262 = vmatmul.mubr.f32.gmra.mrb[0].mxu0 %v189
    %v263 = vpop.f32.mrb[0].mxu0
    %v264 = vadd.f32 %v186, %v263
    %v265 = vpop.f32.mrb[0].mxu0
    %266 = vmatprep.mubr.f32.mxu0 0.0
    %267 = vmatmul.mubr.f32.gmra.mrb[0].mxu0 %v192
    %v268 = vpop.f32.mrb[0].mxu0
    %v269 = vadd.f32 %v186, %v268
    %v270 = vpop.f32.mrb[0].mxu0
    %271 = vmatprep.mubr.f32.mxu0 0.0
    %272 = vmatmul.mubr.f32.gmra.mrb[0].mxu0 %v195
    %v273 = vpop.f32.mrb[0].mxu0
    %v274 = vadd.f32 %v186, %v273
    %v275 = vpop.f32.mrb[0].mxu0
    %276 = vdwg.mxu0
    %v277 = vmax.f32 %v264, 0.0
    %v278 = vmax.f32 %v269, 0.0
    %v279 = vmax.f32 %v274, 0.0
    %v280 = vlaneseq
    %v281 = vshrl.u32 %v280, 7
    %v282 = vsub.s32 2, %v281
    %v283 = vrot.slane %v25, %v282
    %v285 = vsel %vm187, %v277, 0
    %v288 = vsel %vm187, %v278, 0
    %v291 = vsel %vm187, %v279, 0
    %293 = vmatprep.subr.mxu0 0.0
    %294 = vmatpush1.msra.mxu0 %v34
    %295 = vmatprep.subr.mxu0 0.0
    %296 = vmatpush1.msra.mxu0 %v35
    %297 = vmatprep.subr.mxu0 0.0
    %298 = vmatpush1.msra.mxu0 %v36
    %299 = vmatprep.subr.mxu0 0.0
    %300 = vmatpush1.msra.mxu0 %v37
    %301 = vmatprep.subr.mxu0 0.0
    %302 = vmatpush1.msra.mxu0 0.0
    %303 = vmatprep.subr.mxu0 0.0
    %304 = vmatpush1.msra.mxu0 0.0
    %305 = vmatprep.subr.mxu0 0.0
    %306 = vmatpush1.msra.mxu0 0.0
    %307 = vmatprep.subr.mxu0 0.0
    %308 = vmatpush1.msra.mxu0 0.0
    %309 = vmatprep.subr.mxu0 0.0
    %310 = vmatpush1.msra.mxu0 0.0
    %311 = vmatprep.subr.mxu0 0.0
    %312 = vmatpush1.msra.mxu0 0.0
    %313 = vmatprep.subr.mxu0 0.0
    %314 = vmatpush1.msra.mxu0 0.0
    %315 = vmatprep.subr.mxu0 0.0
    %316 = vmatpush1.msra.mxu0 0.0
    %317 = vmatprep.subr.mxu0 0.0
    %318 = vmatpush1.msra.mxu0 0.0
    %319 = vmatprep.subr.mxu0 0.0
    %320 = vmatpush1.msra.mxu0 0.0
    %321 = vmatprep.subr.mxu0 0.0
    %322 = vmatpush1.msra.mxu0 0.0
    %323 = vmatprep.subr.mxu0 0.0
    %324 = vmatpush1.msra.mxu0 0.0
    %325 = vmatprep.subr.mxu0 0.0
    %326 = vmatpush1.msra.mxu0 0.0
    %327 = vmatprep.subr.mxu0 0.0
    %328 = vmatpush1.msra.mxu0 0.0
    %329 = vmatprep.subr.mxu0 0.0
    %330 = vmatpush1.msra.mxu0 0.0
    %331 = vmatprep.subr.mxu0 0.0
    %332 = vmatpush1.msra.mxu0 0.0
    %333 = vmatprep.subr.mxu0 0.0
    %334 = vmatpush1.msra.mxu0 0.0
    %335 = vmatprep.subr.mxu0 0.0
    %336 = vmatpush1.msra.mxu0 0.0
    %337 = vmatprep.subr.mxu0 0.0
    %338 = vmatpush1.msra.mxu0 0.0
    %339 = vmatprep.subr.mxu0 0.0
    %340 = vmatpush1.msra.mxu0 0.0
    %341 = vmatprep.subr.mxu0 0.0
    %342 = vmatpush1.msra.mxu0 0.0
    %343 = vmatprep.subr.mxu0 0.0
    %344 = vmatpush1.msra.mxu0 0.0
    %345 = vmatprep.subr.mxu0 0.0
    %346 = vmatpush1.msra.mxu0 0.0
    %347 = vmatprep.subr.mxu0 0.0
    %348 = vmatpush1.msra.mxu0 0.0
    %349 = vmatprep.subr.mxu0 0.0
    %350 = vmatpush1.msra.mxu0 0.0
    %351 = vmatprep.subr.mxu0 0.0
    %352 = vmatpush1.msra.mxu0 0.0
    %353 = vmatprep.subr.mxu0 0.0
    %354 = vmatpush1.msra.mxu0 0.0
    %355 = vmatprep.subr.mxu0 0.0
    %356 = vmatpush1.msra.mxu0 0.0
    %357 = vmatprep.mubr.f32.mxu0 0.0
    %358 = vmatmul.mubr.f32.gmra.mrb[0].mxu0 %v285
    %v359 = vpop.f32.mrb[0].mxu0
    %v360 = vadd.f32 %v283, %v359
    %v361 = vpop.f32.mrb[0].mxu0
    %362 = vmatprep.mubr.f32.mxu0 0.0
    %363 = vmatmul.mubr.f32.gmra.mrb[0].mxu0 %v288
    %v364 = vpop.f32.mrb[0].mxu0
    %v365 = vadd.f32 %v283, %v364
    %v366 = vpop.f32.mrb[0].mxu0
    %367 = vmatprep.mubr.f32.mxu0 0.0
    %368 = vmatmul.mubr.f32.gmra.mrb[0].mxu0 %v291
    %v369 = vpop.f32.mrb[0].mxu0
    %v370 = vadd.f32 %v283, %v369
    %v371 = vpop.f32.mrb[0].mxu0
    %372 = vdwg.mxu0
    %v373 = vtanh.pop %v360
    %v374 = vtanh.pop %v365
    %v375 = vtanh.pop %v370
    %v376 = vadd.f32 %v373, %v374
    %v377 = vadd.f32 %v376, %v375
    %v378 = vsub.f32 %v377, %v373
    %v379 = vsub.f32 %v377, %v374
    %v380 = vsub.f32 %v377, %v375
    %v381 = vmul.f32 %v378, 0.5
    %v382 = vmul.f32 %v379, 0.5
    %v383 = vmul.f32 %v380, 0.5
    %v384 = vlaneseq
    %v385 = vshrl.u32 %v384, 7
    %v386 = vsub.s32 3, %v385
    %v387 = vrot.slane %v25, %v386
    %vm388 = vcmask 130048
    %v390 = vsel %vm388, %v381, 0
    %v393 = vsel %vm388, %v382, 0
    %v396 = vsel %vm388, %v383, 0
    %398 = vmatprep.subr.mxu0 0.0
    %399 = vmatpush1.msra.mxu0 %v38
    %400 = vmatprep.subr.mxu0 0.0
    %401 = vmatpush1.msra.mxu0 %v39
    %402 = vmatprep.subr.mxu0 0.0
    %403 = vmatpush1.msra.mxu0 0.0
    %404 = vmatprep.subr.mxu0 0.0
    %405 = vmatpush1.msra.mxu0 0.0
    %406 = vmatprep.subr.mxu0 0.0
    %407 = vmatpush1.msra.mxu0 0.0
    %408 = vmatprep.subr.mxu0 0.0
    %409 = vmatpush1.msra.mxu0 0.0
    %410 = vmatprep.subr.mxu0 0.0
    %411 = vmatpush1.msra.mxu0 0.0
    %412 = vmatprep.subr.mxu0 0.0
    %413 = vmatpush1.msra.mxu0 0.0
    %414 = vmatprep.subr.mxu0 0.0
    %415 = vmatpush1.msra.mxu0 0.0
    %416 = vmatprep.subr.mxu0 0.0
    %417 = vmatpush1.msra.mxu0 0.0
    %418 = vmatprep.subr.mxu0 0.0
    %419 = vmatpush1.msra.mxu0 0.0
    %420 = vmatprep.subr.mxu0 0.0
    %421 = vmatpush1.msra.mxu0 0.0
    %422 = vmatprep.subr.mxu0 0.0
    %423 = vmatpush1.msra.mxu0 0.0
    %424 = vmatprep.subr.mxu0 0.0
    %425 = vmatpush1.msra.mxu0 0.0
    %426 = vmatprep.subr.mxu0 0.0
    %427 = vmatpush1.msra.mxu0 0.0
    %428 = vmatprep.subr.mxu0 0.0
    %429 = vmatpush1.msra.mxu0 0.0
    %430 = vmatprep.subr.mxu0 0.0
    %431 = vmatpush1.msra.mxu0 0.0
    %432 = vmatprep.subr.mxu0 0.0
    %433 = vmatpush1.msra.mxu0 0.0
    %434 = vmatprep.subr.mxu0 0.0
    %435 = vmatpush1.msra.mxu0 0.0
    %436 = vmatprep.subr.mxu0 0.0
    %437 = vmatpush1.msra.mxu0 0.0
    %438 = vmatprep.subr.mxu0 0.0
    %439 = vmatpush1.msra.mxu0 0.0
    %440 = vmatprep.subr.mxu0 0.0
    %441 = vmatpush1.msra.mxu0 0.0
    %442 = vmatprep.subr.mxu0 0.0
    %443 = vmatpush1.msra.mxu0 0.0
    %444 = vmatprep.subr.mxu0 0.0
    %445 = vmatpush1.msra.mxu0 0.0
    %446 = vmatprep.subr.mxu0 0.0
    %447 = vmatpush1.msra.mxu0 0.0
    %448 = vmatprep.subr.mxu0 0.0
    %449 = vmatpush1.msra.mxu0 0.0
    %450 = vmatprep.subr.mxu0 0.0
    %451 = vmatpush1.msra.mxu0 0.0
    %452 = vmatprep.subr.mxu0 0.0
    %453 = vmatpush1.msra.mxu0 0.0
    %454 = vmatprep.subr.mxu0 0.0
    %455 = vmatpush1.msra.mxu0 0.0
    %456 = vmatprep.subr.mxu0 0.0
    %457 = vmatpush1.msra.mxu0 0.0
    %458 = vmatprep.subr.mxu0 0.0
    %459 = vmatpush1.msra.mxu0 0.0
    %460 = vmatprep.subr.mxu0 0.0
    %461 = vmatpush1.msra.mxu0 0.0
    %462 = vmatprep.mubr.f32.mxu0 0.0
    %463 = vmatmul.mubr.f32.gmra.mrb[0].mxu0 %v390
    %v464 = vpop.f32.mrb[0].mxu0
    %v465 = vadd.f32 %v387, %v464
    %v466 = vpop.f32.mrb[0].mxu0
    %467 = vmatprep.mubr.f32.mxu0 0.0
    %468 = vmatmul.mubr.f32.gmra.mrb[0].mxu0 %v393
    %v469 = vpop.f32.mrb[0].mxu0
    %v470 = vadd.f32 %v387, %v469
    %v471 = vpop.f32.mrb[0].mxu0
    %472 = vmatprep.mubr.f32.mxu0 0.0
    %473 = vmatmul.mubr.f32.gmra.mrb[0].mxu0 %v396
    %v474 = vpop.f32.mrb[0].mxu0
    %v475 = vadd.f32 %v387, %v474
    %v476 = vpop.f32.mrb[0].mxu0
    %477 = vdwg.mxu0
    %v478 = vmax.f32 %v465, 0.0
    %v479 = vmax.f32 %v470, 0.0
    %v480 = vmax.f32 %v475, 0.0
    %v481 = vadd.f32 %v277, %v478
    %v482 = vadd.f32 %v278, %v479
    %v483 = vadd.f32 %v279, %v480
    %v484 = vlaneseq
    %v485 = vshrl.u32 %v484, 7
    %v486 = vsub.s32 4, %v485
    %v487 = vrot.slane %v25, %v486
    %v488 = vlaneseq
    %v489 = vshrl.u32 %v488, 7
    %v490 = vsub.s32 4, %v489
    %v491 = vrot.slane %v26, %v490
    %v492 = vlaneseq
    %v493 = vshrl.u32 %v492, 7
    %v494 = vsub.s32 4, %v493
    %v495 = vrot.slane %v27, %v494
    %v496 = vlaneseq
    %v497 = vshrl.u32 %v496, 7
    %v498 = vsub.s32 4, %v497
    %v499 = vrot.slane %v28, %v498
    %v501 = vsel %vm187, %v481, 0
    %v504 = vsel %vm187, %v482, 0
    %v507 = vsel %vm187, %v483, 0
    %509 = vmatprep.subr.mxu0 %v41
    %510 = vmatpush1.msra.mxu0 %v40
    %511 = vmatprep.subr.mxu0 %v45
    %512 = vmatpush1.msra.mxu0 %v44
    %513 = vmatprep.subr.mxu0 %v49
    %514 = vmatpush1.msra.mxu0 %v48
    %515 = vmatprep.subr.mxu0 %v53
    %516 = vmatpush1.msra.mxu0 %v52
    %517 = vmatprep.subr.mxu0 0.0
    %518 = vmatpush1.msra.mxu0 0.0
    %519 = vmatprep.subr.mxu0 0.0
    %520 = vmatpush1.msra.mxu0 0.0
    %521 = vmatprep.subr.mxu0 0.0
    %522 = vmatpush1.msra.mxu0 0.0
    %523 = vmatprep.subr.mxu0 0.0
    %524 = vmatpush1.msra.mxu0 0.0
    %525 = vmatprep.subr.mxu0 0.0
    %526 = vmatpush1.msra.mxu0 0.0
    %527 = vmatprep.subr.mxu0 0.0
    %528 = vmatpush1.msra.mxu0 0.0
    %529 = vmatprep.subr.mxu0 0.0
    %530 = vmatpush1.msra.mxu0 0.0
    %531 = vmatprep.subr.mxu0 0.0
    %532 = vmatpush1.msra.mxu0 0.0
    %533 = vmatprep.subr.mxu0 0.0
    %534 = vmatpush1.msra.mxu0 0.0
    %535 = vmatprep.subr.mxu0 0.0
    %536 = vmatpush1.msra.mxu0 0.0
    %537 = vmatprep.subr.mxu0 0.0
    %538 = vmatpush1.msra.mxu0 0.0
    %539 = vmatprep.subr.mxu0 0.0
    %540 = vmatpush1.msra.mxu0 0.0
    %541 = vmatprep.subr.mxu0 0.0
    %542 = vmatpush1.msra.mxu0 0.0
    %543 = vmatprep.subr.mxu0 0.0
    %544 = vmatpush1.msra.mxu0 0.0
    %545 = vmatprep.subr.mxu0 0.0
    %546 = vmatpush1.msra.mxu0 0.0
    %547 = vmatprep.subr.mxu0 0.0
    %548 = vmatpush1.msra.mxu0 0.0
    %549 = vmatprep.subr.mxu0 0.0
    %550 = vmatpush1.msra.mxu0 0.0
    %551 = vmatprep.subr.mxu0 0.0
    %552 = vmatpush1.msra.mxu0 0.0
    %553 = vmatprep.subr.mxu0 0.0
    %554 = vmatpush1.msra.mxu0 0.0
    %555 = vmatprep.subr.mxu0 0.0
    %556 = vmatpush1.msra.mxu0 0.0
    %557 = vmatprep.subr.mxu0 0.0
    %558 = vmatpush1.msra.mxu0 0.0
    %559 = vmatprep.subr.mxu0 0.0
    %560 = vmatpush1.msra.mxu0 0.0
    %561 = vmatprep.subr.mxu0 0.0
    %562 = vmatpush1.msra.mxu0 0.0
    %563 = vmatprep.subr.mxu0 0.0
    %564 = vmatpush1.msra.mxu0 0.0
    %565 = vmatprep.subr.mxu0 0.0
    %566 = vmatpush1.msra.mxu0 0.0
    %567 = vmatprep.subr.mxu0 0.0
    %568 = vmatpush1.msra.mxu0 0.0
    %569 = vmatprep.subr.mxu0 0.0
    %570 = vmatpush1.msra.mxu0 0.0
    %571 = vmatprep.subr.mxu0 0.0
    %572 = vmatpush1.msra.mxu0 0.0
    %573 = vmatprep.mubr.f32.mxu0 0.0
    %574 = vmatmul.mubr.f32.gmra.mrb[0].mxu0 %v501
    %v575 = vpop.f32.mrb[0].mxu0
    %v576 = vadd.f32 %v487, %v575
    %v577 = vpop.f32.mrb[0].mxu0
    %v578 = vadd.f32 %v491, %v577
    %579 = vmatprep.mubr.f32.mxu0 0.0
    %580 = vmatmul.mubr.f32.gmra.mrb[0].mxu0 %v504
    %v581 = vpop.f32.mrb[0].mxu0
    %v582 = vadd.f32 %v487, %v581
    %v583 = vpop.f32.mrb[0].mxu0
    %v584 = vadd.f32 %v491, %v583
    %585 = vmatprep.mubr.f32.mxu0 0.0
    %586 = vmatmul.mubr.f32.gmra.mrb[0].mxu0 %v507
    %v587 = vpop.f32.mrb[0].mxu0
    %v588 = vadd.f32 %v487, %v587
    %v589 = vpop.f32.mrb[0].mxu0
    %v590 = vadd.f32 %v491, %v589
    %591 = vdwg.mxu0
    %592 = vmatprep.subr.mxu0 %v43
    %593 = vmatpush1.msra.mxu0 %v42
    %594 = vmatprep.subr.mxu0 %v47
    %595 = vmatpush1.msra.mxu0 %v46
    %596 = vmatprep.subr.mxu0 %v51
    %597 = vmatpush1.msra.mxu0 %v50
    %598 = vmatprep.subr.mxu0 %v55
    %599 = vmatpush1.msra.mxu0 %v54
    %600 = vmatprep.subr.mxu0 0.0
    %601 = vmatpush1.msra.mxu0 0.0
    %602 = vmatprep.subr.mxu0 0.0
    %603 = vmatpush1.msra.mxu0 0.0
    %604 = vmatprep.subr.mxu0 0.0
    %605 = vmatpush1.msra.mxu0 0.0
    %606 = vmatprep.subr.mxu0 0.0
    %607 = vmatpush1.msra.mxu0 0.0
    %608 = vmatprep.subr.mxu0 0.0
    %609 = vmatpush1.msra.mxu0 0.0
    %610 = vmatprep.subr.mxu0 0.0
    %611 = vmatpush1.msra.mxu0 0.0
    %612 = vmatprep.subr.mxu0 0.0
    %613 = vmatpush1.msra.mxu0 0.0
    %614 = vmatprep.subr.mxu0 0.0
    %615 = vmatpush1.msra.mxu0 0.0
    %616 = vmatprep.subr.mxu0 0.0
    %617 = vmatpush1.msra.mxu0 0.0
    %618 = vmatprep.subr.mxu0 0.0
    %619 = vmatpush1.msra.mxu0 0.0
    %620 = vmatprep.subr.mxu0 0.0
    %621 = vmatpush1.msra.mxu0 0.0
    %622 = vmatprep.subr.mxu0 0.0
    %623 = vmatpush1.msra.mxu0 0.0
    %624 = vmatprep.subr.mxu0 0.0
    %625 = vmatpush1.msra.mxu0 0.0
    %626 = vmatprep.subr.mxu0 0.0
    %627 = vmatpush1.msra.mxu0 0.0
    %628 = vmatprep.subr.mxu0 0.0
    %629 = vmatpush1.msra.mxu0 0.0
    %630 = vmatprep.subr.mxu0 0.0
    %631 = vmatpush1.msra.mxu0 0.0
    %632 = vmatprep.subr.mxu0 0.0
    %633 = vmatpush1.msra.mxu0 0.0
    %634 = vmatprep.subr.mxu0 0.0
    %635 = vmatpush1.msra.mxu0 0.0
    %636 = vmatprep.subr.mxu0 0.0
    %637 = vmatpush1.msra.mxu0 0.0
    %638 = vmatprep.subr.mxu0 0.0
    %639 = vmatpush1.msra.mxu0 0.0
    %640 = vmatprep.subr.mxu0 0.0
    %641 = vmatpush1.msra.mxu0 0.0
    %642 = vmatprep.subr.mxu0 0.0
    %643 = vmatpush1.msra.mxu0 0.0
    %644 = vmatprep.subr.mxu0 0.0
    %645 = vmatpush1.msra.mxu0 0.0
    %646 = vmatprep.subr.mxu0 0.0
    %647 = vmatpush1.msra.mxu0 0.0
    %648 = vmatprep.subr.mxu0 0.0
    %649 = vmatpush1.msra.mxu0 0.0
    %650 = vmatprep.subr.mxu0 0.0
    %651 = vmatpush1.msra.mxu0 0.0
    %652 = vmatprep.subr.mxu0 0.0
    %653 = vmatpush1.msra.mxu0 0.0
    %654 = vmatprep.subr.mxu0 0.0
    %655 = vmatpush1.msra.mxu0 0.0
    %656 = vmatprep.mubr.f32.mxu0 0.0
    %657 = vmatmul.mubr.f32.gmra.mrb[0].mxu0 %v501
    %v658 = vpop.f32.mrb[0].mxu0
    %v659 = vadd.f32 %v495, %v658
    %v660 = vpop.f32.mrb[0].mxu0
    %v661 = vadd.f32 %v499, %v660
    %662 = vmatprep.mubr.f32.mxu0 0.0
    %663 = vmatmul.mubr.f32.gmra.mrb[0].mxu0 %v504
    %v664 = vpop.f32.mrb[0].mxu0
    %v665 = vadd.f32 %v495, %v664
    %v666 = vpop.f32.mrb[0].mxu0
    %v667 = vadd.f32 %v499, %v666
    %668 = vmatprep.mubr.f32.mxu0 0.0
    %669 = vmatmul.mubr.f32.gmra.mrb[0].mxu0 %v507
    %v670 = vpop.f32.mrb[0].mxu0
    %v671 = vadd.f32 %v495, %v670
    %v672 = vpop.f32.mrb[0].mxu0
    %v673 = vadd.f32 %v499, %v672
    %674 = vdwg.mxu0
    %v675 = vlaneseq
    %v676 = vshrl.u32 %v675, 7
    %v677 = vsub.s32 5, %v676
    %v678 = vrot.slane %v25, %v677
    %v679 = vlaneseq
    %v680 = vshrl.u32 %v679, 7
    %v681 = vsub.s32 5, %v680
    %v682 = vrot.slane %v26, %v681
    %v683 = vlaneseq
    %v684 = vshrl.u32 %v683, 7
    %v685 = vsub.s32 5, %v684
    %v686 = vrot.slane %v27, %v685
    %v688 = vsel %vm187, %v81, 0
    %v691 = vsel %vm187, %v83, 0
    %v694 = vsel %vm187, %v85, 0
    %696 = vmatprep.subr.mxu0 %v57
    %697 = vmatpush1.msra.mxu0 %v56
    %698 = vmatprep.subr.mxu0 %v60
    %699 = vmatpush1.msra.mxu0 %v59
    %700 = vmatprep.subr.mxu0 %v63
    %701 = vmatpush1.msra.mxu0 %v62
    %702 = vmatprep.subr.mxu0 %v66
    %703 = vmatpush1.msra.mxu0 %v65
    %704 = vmatprep.subr.mxu0 0.0
    %705 = vmatpush1.msra.mxu0 0.0
    %706 = vmatprep.subr.mxu0 0.0
    %707 = vmatpush1.msra.mxu0 0.0
    %708 = vmatprep.subr.mxu0 0.0
    %709 = vmatpush1.msra.mxu0 0.0
    %710 = vmatprep.subr.mxu0 0.0
    %711 = vmatpush1.msra.mxu0 0.0
    %712 = vmatprep.subr.mxu0 0.0
    %713 = vmatpush1.msra.mxu0 0.0
    %714 = vmatprep.subr.mxu0 0.0
    %715 = vmatpush1.msra.mxu0 0.0
    %716 = vmatprep.subr.mxu0 0.0
    %717 = vmatpush1.msra.mxu0 0.0
    %718 = vmatprep.subr.mxu0 0.0
    %719 = vmatpush1.msra.mxu0 0.0
    %720 = vmatprep.subr.mxu0 0.0
    %721 = vmatpush1.msra.mxu0 0.0
    %722 = vmatprep.subr.mxu0 0.0
    %723 = vmatpush1.msra.mxu0 0.0
    %724 = vmatprep.subr.mxu0 0.0
    %725 = vmatpush1.msra.mxu0 0.0
    %726 = vmatprep.subr.mxu0 0.0
    %727 = vmatpush1.msra.mxu0 0.0
    %728 = vmatprep.subr.mxu0 0.0
    %729 = vmatpush1.msra.mxu0 0.0
    %730 = vmatprep.subr.mxu0 0.0
    %731 = vmatpush1.msra.mxu0 0.0
    %732 = vmatprep.subr.mxu0 0.0
    %733 = vmatpush1.msra.mxu0 0.0
    %734 = vmatprep.subr.mxu0 0.0
    %735 = vmatpush1.msra.mxu0 0.0
    %736 = vmatprep.subr.mxu0 0.0
    %737 = vmatpush1.msra.mxu0 0.0
    %738 = vmatprep.subr.mxu0 0.0
    %739 = vmatpush1.msra.mxu0 0.0
    %740 = vmatprep.subr.mxu0 0.0
    %741 = vmatpush1.msra.mxu0 0.0
    %742 = vmatprep.subr.mxu0 0.0
    %743 = vmatpush1.msra.mxu0 0.0
    %744 = vmatprep.subr.mxu0 0.0
    %745 = vmatpush1.msra.mxu0 0.0
    %746 = vmatprep.subr.mxu0 0.0
    %747 = vmatpush1.msra.mxu0 0.0
    %748 = vmatprep.subr.mxu0 0.0
    %749 = vmatpush1.msra.mxu0 0.0
    %750 = vmatprep.subr.mxu0 0.0
    %751 = vmatpush1.msra.mxu0 0.0
    %752 = vmatprep.subr.mxu0 0.0
    %753 = vmatpush1.msra.mxu0 0.0
    %754 = vmatprep.subr.mxu0 0.0
    %755 = vmatpush1.msra.mxu0 0.0
    %756 = vmatprep.subr.mxu0 0.0
    %757 = vmatpush1.msra.mxu0 0.0
    %758 = vmatprep.subr.mxu0 0.0
    %759 = vmatpush1.msra.mxu0 0.0
    %760 = vmatprep.mubr.f32.mxu0 0.0
    %761 = vmatmul.mubr.f32.gmra.mrb[0].mxu0 %v688
    %v762 = vpop.f32.mrb[0].mxu0
    %v763 = vadd.f32 %v678, %v762
    %v764 = vpop.f32.mrb[0].mxu0
    %v765 = vadd.f32 %v682, %v764
    %766 = vmatprep.mubr.f32.mxu0 0.0
    %767 = vmatmul.mubr.f32.gmra.mrb[0].mxu0 %v691
    %v768 = vpop.f32.mrb[0].mxu0
    %v769 = vadd.f32 %v678, %v768
    %v770 = vpop.f32.mrb[0].mxu0
    %v771 = vadd.f32 %v682, %v770
    %772 = vmatprep.mubr.f32.mxu0 0.0
    %773 = vmatmul.mubr.f32.gmra.mrb[0].mxu0 %v694
    %v774 = vpop.f32.mrb[0].mxu0
    %v775 = vadd.f32 %v678, %v774
    %v776 = vpop.f32.mrb[0].mxu0
    %v777 = vadd.f32 %v682, %v776
    %778 = vdwg.mxu0
    %779 = vmatprep.subr.mxu0 0.0
    %780 = vmatpush1.msra.mxu0 %v58
    %781 = vmatprep.subr.mxu0 0.0
    %782 = vmatpush1.msra.mxu0 %v61
    %783 = vmatprep.subr.mxu0 0.0
    %784 = vmatpush1.msra.mxu0 %v64
    %785 = vmatprep.subr.mxu0 0.0
    %786 = vmatpush1.msra.mxu0 %v67
    %787 = vmatprep.subr.mxu0 0.0
    %788 = vmatpush1.msra.mxu0 0.0
    %789 = vmatprep.subr.mxu0 0.0
    %790 = vmatpush1.msra.mxu0 0.0
    %791 = vmatprep.subr.mxu0 0.0
    %792 = vmatpush1.msra.mxu0 0.0
    %793 = vmatprep.subr.mxu0 0.0
    %794 = vmatpush1.msra.mxu0 0.0
    %795 = vmatprep.subr.mxu0 0.0
    %796 = vmatpush1.msra.mxu0 0.0
    %797 = vmatprep.subr.mxu0 0.0
    %798 = vmatpush1.msra.mxu0 0.0
    %799 = vmatprep.subr.mxu0 0.0
    %800 = vmatpush1.msra.mxu0 0.0
    %801 = vmatprep.subr.mxu0 0.0
    %802 = vmatpush1.msra.mxu0 0.0
    %803 = vmatprep.subr.mxu0 0.0
    %804 = vmatpush1.msra.mxu0 0.0
    %805 = vmatprep.subr.mxu0 0.0
    %806 = vmatpush1.msra.mxu0 0.0
    %807 = vmatprep.subr.mxu0 0.0
    %808 = vmatpush1.msra.mxu0 0.0
    %809 = vmatprep.subr.mxu0 0.0
    %810 = vmatpush1.msra.mxu0 0.0
    %811 = vmatprep.subr.mxu0 0.0
    %812 = vmatpush1.msra.mxu0 0.0
    %813 = vmatprep.subr.mxu0 0.0
    %814 = vmatpush1.msra.mxu0 0.0
    %815 = vmatprep.subr.mxu0 0.0
    %816 = vmatpush1.msra.mxu0 0.0
    %817 = vmatprep.subr.mxu0 0.0
    %818 = vmatpush1.msra.mxu0 0.0
    %819 = vmatprep.subr.mxu0 0.0
    %820 = vmatpush1.msra.mxu0 0.0
    %821 = vmatprep.subr.mxu0 0.0
    %822 = vmatpush1.msra.mxu0 0.0
    %823 = vmatprep.subr.mxu0 0.0
    %824 = vmatpush1.msra.mxu0 0.0
    %825 = vmatprep.subr.mxu0 0.0
    %826 = vmatpush1.msra.mxu0 0.0
    %827 = vmatprep.subr.mxu0 0.0
    %828 = vmatpush1.msra.mxu0 0.0
    %829 = vmatprep.subr.mxu0 0.0
    %830 = vmatpush1.msra.mxu0 0.0
    %831 = vmatprep.subr.mxu0 0.0
    %832 = vmatpush1.msra.mxu0 0.0
    %833 = vmatprep.subr.mxu0 0.0
    %834 = vmatpush1.msra.mxu0 0.0
    %835 = vmatprep.subr.mxu0 0.0
    %836 = vmatpush1.msra.mxu0 0.0
    %837 = vmatprep.subr.mxu0 0.0
    %838 = vmatpush1.msra.mxu0 0.0
    %839 = vmatprep.subr.mxu0 0.0
    %840 = vmatpush1.msra.mxu0 0.0
    %841 = vmatprep.subr.mxu0 0.0
    %842 = vmatpush1.msra.mxu0 0.0
    %843 = vmatprep.mubr.f32.mxu0 0.0
    %844 = vmatmul.mubr.f32.gmra.mrb[0].mxu0 %v688
    %v845 = vpop.f32.mrb[0].mxu0
    %v846 = vadd.f32 %v686, %v845
    %v847 = vpop.f32.mrb[0].mxu0
    %848 = vmatprep.mubr.f32.mxu0 0.0
    %849 = vmatmul.mubr.f32.gmra.mrb[0].mxu0 %v691
    %v850 = vpop.f32.mrb[0].mxu0
    %v851 = vadd.f32 %v686, %v850
    %v852 = vpop.f32.mrb[0].mxu0
    %853 = vmatprep.mubr.f32.mxu0 0.0
    %854 = vmatmul.mubr.f32.gmra.mrb[0].mxu0 %v694
    %v855 = vpop.f32.mrb[0].mxu0
    %v856 = vadd.f32 %v686, %v855
    %v857 = vpop.f32.mrb[0].mxu0
    %858 = vdwg.mxu0
    %v859 = vadd.f32 %v576, %v763
    %v860 = vadd.f32 %v582, %v769
    %v861 = vadd.f32 %v588, %v775
    %v862 = vxor.u32 %v859, 2147483648
    %v863 = vxor.u32 %v860, 2147483648
    %v864 = vxor.u32 %v861, 2147483648
    %v865 = vmul.f32 %v862, 1.442695
    %v866 = vpow.pop %v865
    %v867 = vmul.f32 %v863, 1.442695
    %v868 = vpow.pop %v867
    %v869 = vmul.f32 %v864, 1.442695
    %v870 = vpow.pop %v869
    %v871 = vadd.f32 %v866, 1.0
    %v872 = vadd.f32 %v868, 1.0
    %v873 = vadd.f32 %v870, 1.0
    %v874 = vrcp.pop %v871
    %v875 = vmul.f32 1.0, %v874
    %v876 = vrcp.pop %v872
    %v877 = vmul.f32 1.0, %v876
    %v878 = vrcp.pop %v873
    %v879 = vmul.f32 1.0, %v878
    %v880 = vadd.f32 %v578, %v765
    %v881 = vadd.f32 %v584, %v771
    %v882 = vadd.f32 %v590, %v777
    %v883 = vxor.u32 %v880, 2147483648
    %v884 = vxor.u32 %v881, 2147483648
    %v885 = vxor.u32 %v882, 2147483648
    %v886 = vmul.f32 %v883, 1.442695
    %v887 = vpow.pop %v886
    %v888 = vmul.f32 %v884, 1.442695
    %v889 = vpow.pop %v888
    %v890 = vmul.f32 %v885, 1.442695
    %v891 = vpow.pop %v890
    %v892 = vadd.f32 %v887, 1.0
    %v893 = vadd.f32 %v889, 1.0
    %v894 = vadd.f32 %v891, 1.0
    %v895 = vrcp.pop %v892
    %v896 = vmul.f32 1.0, %v895
    %v897 = vrcp.pop %v893
    %v898 = vmul.f32 1.0, %v897
    %v899 = vrcp.pop %v894
    %v900 = vmul.f32 1.0, %v899
    %v901 = vmul.f32 %v875, %v846
    %v902 = vmul.f32 %v877, %v851
    %v903 = vmul.f32 %v879, %v856
    %v904 = vadd.f32 %v659, %v901
    %v905 = vadd.f32 %v665, %v902
    %v906 = vadd.f32 %v671, %v903
    %v907 = vtanh.pop %v904
    %v908 = vtanh.pop %v905
    %v909 = vtanh.pop %v906
    %v910 = vsub.f32 1.0, %v896
    %v911 = vsub.f32 1.0, %v898
    %v912 = vsub.f32 1.0, %v900
    %v913 = vmul.f32 %v910, %v907
    %v914 = vmul.f32 %v911, %v908
    %v915 = vmul.f32 %v912, %v909
    %v916 = vmul.f32 %v896, %v81
    %v917 = vmul.f32 %v898, %v83
    %v918 = vmul.f32 %v900, %v85
    %v919 = vadd.f32 %v913, %v916
    %v920 = vadd.f32 %v914, %v917
    %v921 = vadd.f32 %v915, %v918
    %v923 = vsel %vm187, %v919, 0
    %v926 = vsel %vm187, %v920, 0
    %v929 = vsel %vm187, %v921, 0
    %931 = vmatprep.subr.mxu0 0.0
    %932 = vmatpush1.msra.mxu0 %v68
    %933 = vmatprep.subr.mxu0 0.0
    %934 = vmatpush1.msra.mxu0 %v69
    %935 = vmatprep.subr.mxu0 0.0
    %936 = vmatpush1.msra.mxu0 %v70
    %937 = vmatprep.subr.mxu0 0.0
    %938 = vmatpush1.msra.mxu0 %v71
    %939 = vmatprep.subr.mxu0 0.0
    %940 = vmatpush1.msra.mxu0 0.0
    %941 = vmatprep.subr.mxu0 0.0
    %942 = vmatpush1.msra.mxu0 0.0
    %943 = vmatprep.subr.mxu0 0.0
    %944 = vmatpush1.msra.mxu0 0.0
    %945 = vmatprep.subr.mxu0 0.0
    %946 = vmatpush1.msra.mxu0 0.0
    %947 = vmatprep.subr.mxu0 0.0
    %948 = vmatpush1.msra.mxu0 0.0
    %949 = vmatprep.subr.mxu0 0.0
    %950 = vmatpush1.msra.mxu0 0.0
    %951 = vmatprep.subr.mxu0 0.0
    %952 = vmatpush1.msra.mxu0 0.0
    %953 = vmatprep.subr.mxu0 0.0
    %954 = vmatpush1.msra.mxu0 0.0
    %955 = vmatprep.subr.mxu0 0.0
    %956 = vmatpush1.msra.mxu0 0.0
    %957 = vmatprep.subr.mxu0 0.0
    %958 = vmatpush1.msra.mxu0 0.0
    %959 = vmatprep.subr.mxu0 0.0
    %960 = vmatpush1.msra.mxu0 0.0
    %961 = vmatprep.subr.mxu0 0.0
    %962 = vmatpush1.msra.mxu0 0.0
    %963 = vmatprep.subr.mxu0 0.0
    %964 = vmatpush1.msra.mxu0 0.0
    %965 = vmatprep.subr.mxu0 0.0
    %966 = vmatpush1.msra.mxu0 0.0
    %967 = vmatprep.subr.mxu0 0.0
    %968 = vmatpush1.msra.mxu0 0.0
    %969 = vmatprep.subr.mxu0 0.0
    %970 = vmatpush1.msra.mxu0 0.0
    %971 = vmatprep.subr.mxu0 0.0
    %972 = vmatpush1.msra.mxu0 0.0
    %973 = vmatprep.subr.mxu0 0.0
    %974 = vmatpush1.msra.mxu0 0.0
    %975 = vmatprep.subr.mxu0 0.0
    %976 = vmatpush1.msra.mxu0 0.0
    %977 = vmatprep.subr.mxu0 0.0
    %978 = vmatpush1.msra.mxu0 0.0
    %979 = vmatprep.subr.mxu0 0.0
    %980 = vmatpush1.msra.mxu0 0.0
    %981 = vmatprep.subr.mxu0 0.0
    %982 = vmatpush1.msra.mxu0 0.0
    %983 = vmatprep.subr.mxu0 0.0
    %984 = vmatpush1.msra.mxu0 0.0
    %985 = vmatprep.subr.mxu0 0.0
    %986 = vmatpush1.msra.mxu0 0.0
    %987 = vmatprep.subr.mxu0 0.0
    %988 = vmatpush1.msra.mxu0 0.0
    %989 = vmatprep.subr.mxu0 0.0
    %990 = vmatpush1.msra.mxu0 0.0
    %991 = vmatprep.subr.mxu0 0.0
    %992 = vmatpush1.msra.mxu0 0.0
    %993 = vmatprep.subr.mxu0 0.0
    %994 = vmatpush1.msra.mxu0 0.0
    %995 = vmatprep.mubr.f32.mxu0 0.0
    %996 = vmatmul.mubr.f32.gmra.mrb[0].mxu0 %v923
    %v997 = vpop.f32.mrb[0].mxu0
    %v998 = vadd.f32 0.0, %v997
    %v999 = vpop.f32.mrb[0].mxu0
    %1000 = vmatprep.mubr.f32.mxu0 0.0
    %1001 = vmatmul.mubr.f32.gmra.mrb[0].mxu0 %v926
    %v1002 = vpop.f32.mrb[0].mxu0
    %v1003 = vadd.f32 0.0, %v1002
    %v1004 = vpop.f32.mrb[0].mxu0
    %1005 = vmatprep.mubr.f32.mxu0 0.0
    %1006 = vmatmul.mubr.f32.gmra.mrb[0].mxu0 %v929
    %v1007 = vpop.f32.mrb[0].mxu0
    %v1008 = vadd.f32 0.0, %v1007
    %v1009 = vpop.f32.mrb[0].mxu0
    %1010 = vdwg.mxu0
    %v1011 = vadd.f32 %v661, %v998
    %v1012 = vadd.f32 %v667, %v1003
    %v1013 = vadd.f32 %v673, %v1008
    %v1014 = vmax.f32 %v1011, 0.0
    %v1015 = vmax.f32 %v1012, 0.0
    %v1016 = vmax.f32 %v1013, 0.0
    %v1017 = vlaneseq
    %v1018 = vshrl.u32 %v1017, 7
    %v1019 = vsub.s32 6, %v1018
    %v1020 = vrot.slane %v25, %v1019
    %vm1021 = vcmask 523264
    %v1023 = vsel %vm1021, %v1014, 0
    %v1026 = vsel %vm1021, %v1015, 0
    %v1029 = vsel %vm1021, %v1016, 0
    %1031 = vmatprep.subr.mxu0 0.0
    %1032 = vmatpush1.msra.mxu0 %v72
    %1033 = vmatprep.subr.mxu0 0.0
    %1034 = vmatpush1.msra.mxu0 %v73
    %1035 = vmatprep.subr.mxu0 0.0
    %1036 = vmatpush1.msra.mxu0 %v74
    %1037 = vmatprep.subr.mxu0 0.0
    %1038 = vmatpush1.msra.mxu0 %v75
    %1039 = vmatprep.subr.mxu0 0.0
    %1040 = vmatpush1.msra.mxu0 %v76
    %1041 = vmatprep.subr.mxu0 0.0
    %1042 = vmatpush1.msra.mxu0 %v77
    %1043 = vmatprep.subr.mxu0 0.0
    %1044 = vmatpush1.msra.mxu0 %v78
    %1045 = vmatprep.subr.mxu0 0.0
    %1046 = vmatpush1.msra.mxu0 %v79
    %1047 = vmatprep.subr.mxu0 0.0
    %1048 = vmatpush1.msra.mxu0 0.0
    %1049 = vmatprep.subr.mxu0 0.0
    %1050 = vmatpush1.msra.mxu0 0.0
    %1051 = vmatprep.subr.mxu0 0.0
    %1052 = vmatpush1.msra.mxu0 0.0
    %1053 = vmatprep.subr.mxu0 0.0
    %1054 = vmatpush1.msra.mxu0 0.0
    %1055 = vmatprep.subr.mxu0 0.0
    %1056 = vmatpush1.msra.mxu0 0.0
    %1057 = vmatprep.subr.mxu0 0.0
    %1058 = vmatpush1.msra.mxu0 0.0
    %1059 = vmatprep.subr.mxu0 0.0
    %1060 = vmatpush1.msra.mxu0 0.0
    %1061 = vmatprep.subr.mxu0 0.0
    %1062 = vmatpush1.msra.mxu0 0.0
    %1063 = vmatprep.subr.mxu0 0.0
    %1064 = vmatpush1.msra.mxu0 0.0
    %1065 = vmatprep.subr.mxu0 0.0
    %1066 = vmatpush1.msra.mxu0 0.0
    %1067 = vmatprep.subr.mxu0 0.0
    %1068 = vmatpush1.msra.mxu0 0.0
    %1069 = vmatprep.subr.mxu0 0.0
    %1070 = vmatpush1.msra.mxu0 0.0
    %1071 = vmatprep.subr.mxu0 0.0
    %1072 = vmatpush1.msra.mxu0 0.0
    %1073 = vmatprep.subr.mxu0 0.0
    %1074 = vmatpush1.msra.mxu0 0.0
    %1075 = vmatprep.subr.mxu0 0.0
    %1076 = vmatpush1.msra.mxu0 0.0
    %1077 = vmatprep.subr.mxu0 0.0
    %1078 = vmatpush1.msra.mxu0 0.0
    %1079 = vmatprep.subr.mxu0 0.0
    %1080 = vmatpush1.msra.mxu0 0.0
    %1081 = vmatprep.subr.mxu0 0.0
    %1082 = vmatpush1.msra.mxu0 0.0
    %1083 = vmatprep.subr.mxu0 0.0
    %1084 = vmatpush1.msra.mxu0 0.0
    %1085 = vmatprep.subr.mxu0 0.0
    %1086 = vmatpush1.msra.mxu0 0.0
    %1087 = vmatprep.subr.mxu0 0.0
    %1088 = vmatpush1.msra.mxu0 0.0
    %1089 = vmatprep.subr.mxu0 0.0
    %1090 = vmatpush1.msra.mxu0 0.0
    %1091 = vmatprep.subr.mxu0 0.0
    %1092 = vmatpush1.msra.mxu0 0.0
    %1093 = vmatprep.subr.mxu0 0.0
    %1094 = vmatpush1.msra.mxu0 0.0
    %1095 = vmatprep.mubr.f32.mxu0 0.0
    %1096 = vmatmul.mubr.f32.gmra.mrb[0].mxu0 %v1023
    %v1097 = vpop.f32.mrb[0].mxu0
    %v1098 = vadd.f32 %v1020, %v1097
    %v1099 = vpop.f32.mrb[0].mxu0
    %1100 = vmatprep.mubr.f32.mxu0 0.0
    %1101 = vmatmul.mubr.f32.gmra.mrb[0].mxu0 %v1026
    %v1102 = vpop.f32.mrb[0].mxu0
    %v1103 = vadd.f32 %v1020, %v1102
    %v1104 = vpop.f32.mrb[0].mxu0
    %1105 = vmatprep.mubr.f32.mxu0 0.0
    %1106 = vmatmul.mubr.f32.gmra.mrb[0].mxu0 %v1029
    %v1107 = vpop.f32.mrb[0].mxu0
    %v1108 = vadd.f32 %v1020, %v1107
    %v1109 = vpop.f32.mrb[0].mxu0
    %1110 = vdwg.mxu0
    %1111 = vrot.lane.b32.xlu0 %v919, 96
    %v1112 = vpop.permute.xlu0 %1111
    %1113 = vrot.lane.b32.xlu0 %v920, 96
    %v1114 = vpop.permute.xlu0 %1113
    %1115 = vrot.lane.b32.xlu0 %v921, 96
    %v1116 = vpop.permute.xlu0 %1115
    %vm1120 = vcmask 785408
    %v1121 = vsel %vm1120, %v1098, %v1112
    %v1122 = vsel %vm1120, %v1103, %v1114
    %v1123 = vsel %vm1120, %v1108, %v1116
    %1124 = vst [vmem:[%s2] sm:$0xff] %v1121
    %1125 = vst [vmem:[%s2 + $0x8] sm:$0xff] %v1122
    %1126 = vst [vmem:[%s2 + $0x10] sm:$0xff] %v1123
    // Predicated region
    $region14: #{rollout.1} parent=1 // pred_check
      _
    $region15: #{rollout.1} parent=1 // pred_check_branch
      %1128 = sbr.rel (0) target = $region17
    $region16: #{rollout.1} parent=1 // pred_region
      _
    $region17: #{rollout.1} parent=1 // pred_fallthru
      _
    // Predicated region
    $region18: #{rollout.1} parent=1 // pred_check
      _
    $region19: #{rollout.1} parent=1 // pred_check_branch
      %1130 = sbr.rel (0) target = $region21
    $region20: #{rollout.1} parent=1 // pred_region
      _
    $region21: #{rollout.1} parent=1 // pred_fallthru
      _
    %1131 = vsyncpa [#allocation3], 1

</llo_original>
